<compile_context>
chip_gen: v6e
topology: v6e:2x2x1
jax: 0.10.0
libtpu: 0.0.40
codegen_flags: <defaults>
</compile_context>

<pallas_src>
import jax
import jax.numpy as jnp
from jax.experimental import pallas as pl
from jax.experimental.pallas import tpu as pltpu


_LAYER_DIMS = [(12, 32), (32, 64), (64, 128), (128, 256)]
_NUM_HEADS = 5
_IN_FEATURES = 12
_LANES = 128
_MIN_GRID_STEPS = 4          # keep >=4 grid steps when B allows (v7x megacore + DMA overlap)
_DEFAULT_BLOCK_B = 2048      # lane-aligned batch tile; ~6 MiB live VMEM -> safe on v5e/v6e/v7x


def _round_up(n: int, m: int) -> int:
    return (n + m - 1) // m * m


def mlp_multihead_kernel(x_ref,
                         w1_ref, b1_ref,
                         w2_ref, b2_ref,
                         w3_ref, b3_ref,
                         w4_ref, b4_ref,
                         wo_ref, bo_ref,
                         out_ref):
    # Feature-major hot path per batch tile: 5 MXU matmuls (bf16 in, f32 acc),
    # VPU bias+ReLU, EUP sigmoid, one lane-dense [5, TB] store.
    h = x_ref[...]  # bf16 [12, TB], already cast in the wrapper

    h = jnp.dot(w1_ref[...], h, preferred_element_type=jnp.float32) + b1_ref[...]
    h = jnp.maximum(h, 0.0).astype(jnp.bfloat16)

    h = jnp.dot(w2_ref[...], h, preferred_element_type=jnp.float32) + b2_ref[...]
    h = jnp.maximum(h, 0.0).astype(jnp.bfloat16)

    h = jnp.dot(w3_ref[...], h, preferred_element_type=jnp.float32) + b3_ref[...]
    h = jnp.maximum(h, 0.0).astype(jnp.bfloat16)

    h = jnp.dot(w4_ref[...], h, preferred_element_type=jnp.float32) + b4_ref[...]
    h = jnp.maximum(h, 0.0).astype(jnp.bfloat16)

    logits = jnp.dot(wo_ref[...], h, preferred_element_type=jnp.float32) + bo_ref[...]
    out_ref[...] = jax.nn.sigmoid(logits)


def multi_head_binary_forward(x, params, *, block_b=_DEFAULT_BLOCK_B, fused=False):
    """x: [B, 12] float. params: 10 arrays (w1,b1,...,w4,b4,wo,bo) in [out,in]/[out,1] layout.

    Returns a tuple of five [B, 1] float32 arrays (PyTorch semantics), or the
    fused [B, 5] array if fused=True.
    """
    B, F = x.shape
    assert F == _IN_FEATURES, f"expected {_IN_FEATURES} input features, got {F}"

    # Lane-aligned batch tile: multiple of 128, at most block_b, and (when B is
    # large enough) small enough that the grid has >= _MIN_GRID_STEPS steps so
    # both v7x TensorCores get work and x/out DMAs double-buffer across tiles.
    target = _round_up(pl.cdiv(_round_up(B, _LANES), _MIN_GRID_STEPS), _LANES)
    tb = max(_LANES, min(_round_up(block_b, _LANES), target))
    bp = _round_up(B, tb)

    # bf16 + feature-major: single fused transpose(+pad) copy of the [B, 12] input.
    xt = x.astype(jnp.bfloat16).T            # [12, B] bf16
    if bp != B:
        xt = jnp.pad(xt, ((0, 0), (0, bp - B)))

    grid = (bp // tb,)

    # Weights/biases: constant block index -> fetched once, VMEM-resident.
    weight_specs = [pl.BlockSpec(p.shape, lambda i: (0, 0)) for p in params]

    out = pl.pallas_call(
        mlp_multihead_kernel,
        out_shape=jax.ShapeDtypeStruct((_NUM_HEADS, bp), jnp.float32),
        grid=grid,
        in_specs=[pl.BlockSpec((_IN_FEATURES, tb), lambda i: (0, i))] + weight_specs,
        out_specs=pl.BlockSpec((_NUM_HEADS, tb), lambda i: (0, i)),
        compiler_params=pltpu.CompilerParams(
            # Batch tiles are independent -> shard the grid across both TCs on
            # v7x; harmless no-op on single-core v5e/v6e.
            dimension_semantics=("parallel",)),
    )(xt, *params)

    out = out[:, :B].T                        # [B, 5] f32, padded rows dropped
    if fused:
        return out
    return tuple(out[:, i:i + 1] for i in range(_NUM_HEADS))


def init_params(key):
    """Deterministic init matching the PyTorch module's shapes.

    Weights are stored in PyTorch's native [out, in] orientation (bf16, which is
    also the kernel's feature-major compute layout); biases are [out, 1] f32.
    The five Linear(256, 1) heads are fused into [5, 256] / [5, 1].
    """
    params = []
    keys = jax.random.split(key, 2 * len(_LAYER_DIMS) + 2)
    ki = 0
    for (din, dout) in _LAYER_DIMS:
        bound = 1.0 / float(din) ** 0.5
        w = jax.random.uniform(keys[ki], (dout, din), jnp.float32, -bound, bound)
        b = jax.random.uniform(keys[ki + 1], (dout, 1), jnp.float32, -bound, bound)
        params += [w.astype(jnp.bfloat16), b]
        ki += 2
    bound = 1.0 / 16.0
    wo = jax.random.uniform(keys[ki], (_NUM_HEADS, 256), jnp.float32, -bound, bound)
    bo = jax.random.uniform(keys[ki + 1], (_NUM_HEADS, 1), jnp.float32, -bound, bound)
    params += [wo.astype(jnp.bfloat16), bo]
    return params


def reference_forward(x, params):
    """Pure-JAX reference with the same bf16-matmul / f32-accumulate arithmetic."""
    w1, b1, w2, b2, w3, b3, w4, b4, wo, bo = params

    def lin(w, h, b):
        return jnp.dot(w, h, preferred_element_type=jnp.float32) + b

    h = x.astype(jnp.bfloat16).T
    h = jnp.maximum(lin(w1, h, b1), 0.0).astype(jnp.bfloat16)
    h = jnp.maximum(lin(w2, h, b2), 0.0).astype(jnp.bfloat16)
    h = jnp.maximum(lin(w3, h, b3), 0.0).astype(jnp.bfloat16)
    h = jnp.maximum(lin(w4, h, b4), 0.0).astype(jnp.bfloat16)
    out = jax.nn.sigmoid(lin(wo, h, bo)).T    # [B, 5]
    return tuple(out[:, i:i + 1] for i in range(_NUM_HEADS))


if __name__ == "__main__":
    key = jax.random.PRNGKey(0)
    pkey, xkey1, xkey2 = jax.random.split(key, 3)
    params = init_params(pkey)

    # Case 1: small batch, single 128-lane tile (rows 8..127 are zero padding).
    B1 = 8
    x1 = jax.random.normal(xkey1, (B1, _IN_FEATURES), dtype=jnp.float32)
    outs1 = jax.block_until_ready(multi_head_binary_forward(x1, params))
    refs1 = reference_forward(x1, params)
    for o, r in zip(outs1, refs1):
        assert o.shape == (B1, 1), o.shape
        assert jnp.allclose(o, r, atol=1e-3, rtol=1e-3), "mismatch vs reference (B=8)"

    # Case 2: ragged batch exercising the multi-tile + padded-tail path
    # (tb=128 -> grid=(3,), last tile has 44 real rows + 84 padded).
    B2 = 300
    x2 = jax.random.normal(xkey2, (B2, _IN_FEATURES), dtype=jnp.float32)
    outs2 = jax.block_until_ready(
        multi_head_binary_forward(x2, params, block_b=128))
    refs2 = reference_forward(x2, params)
    for o, r in zip(outs2, refs2):
        assert o.shape == (B2, 1), o.shape
        assert jnp.allclose(o, r, atol=1e-3, rtol=1e-3), "mismatch vs reference (B=300)"

    print("KERNEL_OK")
</pallas_src>

<mosaic_0001>
module attributes {stable_mosaic.version = 11 : i64} {
  func.func @mlp_multihead_kernel(%arg0: i32, %arg1: memref<12x128xbf16, #tpu.memory_space<vmem>>, %arg2: memref<32x12xbf16, #tpu.memory_space<vmem>>, %arg3: memref<32x1xf32, #tpu.memory_space<vmem>>, %arg4: memref<64x32xbf16, #tpu.memory_space<vmem>>, %arg5: memref<64x1xf32, #tpu.memory_space<vmem>>, %arg6: memref<128x64xbf16, #tpu.memory_space<vmem>>, %arg7: memref<128x1xf32, #tpu.memory_space<vmem>>, %arg8: memref<256x128xbf16, #tpu.memory_space<vmem>>, %arg9: memref<256x1xf32, #tpu.memory_space<vmem>>, %arg10: memref<5x256xbf16, #tpu.memory_space<vmem>>, %arg11: memref<5x1xf32, #tpu.memory_space<vmem>>, %arg12: memref<5x128xf32, #tpu.memory_space<vmem>>) attributes {dimension_semantics = [#tpu.dimension_semantics<parallel>], iteration_bounds = array<i64: 1>, scalar_prefetch = 0 : i64, scratch_operands = 0 : i64, tpu.core_type = #tpu.core_type<tc>, window_params = [{transform_indices = @transform_0, window_bounds = array<i64: 12, 128>}, {pipeline_mode = #tpu.pipeline_mode<synchronous>, transform_indices = @transform_1, window_bounds = array<i64: 32, 12>}, {pipeline_mode = #tpu.pipeline_mode<synchronous>, transform_indices = @transform_2, window_bounds = array<i64: 32, 1>}, {pipeline_mode = #tpu.pipeline_mode<synchronous>, transform_indices = @transform_3, window_bounds = array<i64: 64, 32>}, {pipeline_mode = #tpu.pipeline_mode<synchronous>, transform_indices = @transform_4, window_bounds = array<i64: 64, 1>}, {pipeline_mode = #tpu.pipeline_mode<synchronous>, transform_indices = @transform_5, window_bounds = array<i64: 128, 64>}, {pipeline_mode = #tpu.pipeline_mode<synchronous>, transform_indices = @transform_6, window_bounds = array<i64: 128, 1>}, {pipeline_mode = #tpu.pipeline_mode<synchronous>, transform_indices = @transform_7, window_bounds = array<i64: 256, 128>}, {pipeline_mode = #tpu.pipeline_mode<synchronous>, transform_indices = @transform_8, window_bounds = array<i64: 256, 1>}, {pipeline_mode = #tpu.pipeline_mode<synchronous>, transform_indices = @transform_9, window_bounds = array<i64: 5, 256>}, {pipeline_mode = #tpu.pipeline_mode<synchronous>, transform_indices = @transform_10, window_bounds = array<i64: 5, 1>}, {transform_indices = @transform_11, window_bounds = array<i64: 5, 128>}]} {
    %c0 = arith.constant 0 : index
    %c0_0 = arith.constant 0 : index
    %0 = vector.load %arg1[%c0, %c0_0] : memref<12x128xbf16, #tpu.memory_space<vmem>>, vector<12x128xbf16>
    %c0_1 = arith.constant 0 : index
    %c0_2 = arith.constant 0 : index
    %1 = vector.load %arg2[%c0_1, %c0_2] : memref<32x12xbf16, #tpu.memory_space<vmem>>, vector<32x12xbf16>
    %cst = arith.constant dense<0.000000e+00> : vector<32x128xf32>
    %2 = tpu.matmul %1, %0, %cst {dimension_numbers = #tpu.dot_dimension_numbers<[1], [0], [0], [1], [0, 0, 1, 1], [], []>} : vector<32x12xbf16>, vector<12x128xbf16>, vector<32x128xf32> -> vector<32x128xf32>
    %c0_3 = arith.constant 0 : index
    %c0_4 = arith.constant 0 : index
    %3 = vector.load %arg3[%c0_3, %c0_4] : memref<32x1xf32, #tpu.memory_space<vmem>>, vector<32x1xf32>
    %4 = vector.broadcast %3 : vector<32x1xf32> to vector<32x128xf32>
    %5 = arith.addf %2, %4 : vector<32x128xf32>
    %cst_5 = arith.constant 0.000000e+00 : f32
    %6 = vector.broadcast %cst_5 : f32 to vector<32x128xf32>
    %7 = arith.maximumf %5, %6 : vector<32x128xf32>
    %8 = arith.truncf %7 : vector<32x128xf32> to vector<32x128xbf16>
    %c0_6 = arith.constant 0 : index
    %c0_7 = arith.constant 0 : index
    %9 = vector.load %arg4[%c0_6, %c0_7] : memref<64x32xbf16, #tpu.memory_space<vmem>>, vector<64x32xbf16>
    %cst_8 = arith.constant dense<0.000000e+00> : vector<64x128xf32>
    %10 = tpu.matmul %9, %8, %cst_8 {dimension_numbers = #tpu.dot_dimension_numbers<[1], [0], [0], [1], [0, 0, 1, 1], [], []>} : vector<64x32xbf16>, vector<32x128xbf16>, vector<64x128xf32> -> vector<64x128xf32>
    %c0_9 = arith.constant 0 : index
    %c0_10 = arith.constant 0 : index
    %11 = vector.load %arg5[%c0_9, %c0_10] : memref<64x1xf32, #tpu.memory_space<vmem>>, vector<64x1xf32>
    %12 = vector.broadcast %11 : vector<64x1xf32> to vector<64x128xf32>
    %13 = arith.addf %10, %12 : vector<64x128xf32>
    %cst_11 = arith.constant 0.000000e+00 : f32
    %14 = vector.broadcast %cst_11 : f32 to vector<64x128xf32>
    %15 = arith.maximumf %13, %14 : vector<64x128xf32>
    %16 = arith.truncf %15 : vector<64x128xf32> to vector<64x128xbf16>
    %c0_12 = arith.constant 0 : index
    %c0_13 = arith.constant 0 : index
    %17 = vector.load %arg6[%c0_12, %c0_13] : memref<128x64xbf16, #tpu.memory_space<vmem>>, vector<128x64xbf16>
    %cst_14 = arith.constant dense<0.000000e+00> : vector<128x128xf32>
    %18 = tpu.matmul %17, %16, %cst_14 {dimension_numbers = #tpu.dot_dimension_numbers<[1], [0], [0], [1], [0, 0, 1, 1], [], []>} : vector<128x64xbf16>, vector<64x128xbf16>, vector<128x128xf32> -> vector<128x128xf32>
    %c0_15 = arith.constant 0 : index
    %c0_16 = arith.constant 0 : index
    %19 = vector.load %arg7[%c0_15, %c0_16] : memref<128x1xf32, #tpu.memory_space<vmem>>, vector<128x1xf32>
    %20 = vector.broadcast %19 : vector<128x1xf32> to vector<128x128xf32>
    %21 = arith.addf %18, %20 : vector<128x128xf32>
    %cst_17 = arith.constant 0.000000e+00 : f32
    %22 = vector.broadcast %cst_17 : f32 to vector<128x128xf32>
    %23 = arith.maximumf %21, %22 : vector<128x128xf32>
    %24 = arith.truncf %23 : vector<128x128xf32> to vector<128x128xbf16>
    %c0_18 = arith.constant 0 : index
    %c0_19 = arith.constant 0 : index
    %25 = vector.load %arg8[%c0_18, %c0_19] : memref<256x128xbf16, #tpu.memory_space<vmem>>, vector<256x128xbf16>
    %cst_20 = arith.constant dense<0.000000e+00> : vector<256x128xf32>
    %26 = tpu.matmul %25, %24, %cst_20 {dimension_numbers = #tpu.dot_dimension_numbers<[1], [0], [0], [1], [0, 0, 1, 1], [], []>} : vector<256x128xbf16>, vector<128x128xbf16>, vector<256x128xf32> -> vector<256x128xf32>
    %c0_21 = arith.constant 0 : index
    %c0_22 = arith.constant 0 : index
    %27 = vector.load %arg9[%c0_21, %c0_22] : memref<256x1xf32, #tpu.memory_space<vmem>>, vector<256x1xf32>
    %28 = vector.broadcast %27 : vector<256x1xf32> to vector<256x128xf32>
    %29 = arith.addf %26, %28 : vector<256x128xf32>
    %cst_23 = arith.constant 0.000000e+00 : f32
    %30 = vector.broadcast %cst_23 : f32 to vector<256x128xf32>
    %31 = arith.maximumf %29, %30 : vector<256x128xf32>
    %32 = arith.truncf %31 : vector<256x128xf32> to vector<256x128xbf16>
    %c0_24 = arith.constant 0 : index
    %c0_25 = arith.constant 0 : index
    %33 = vector.load %arg10[%c0_24, %c0_25] : memref<5x256xbf16, #tpu.memory_space<vmem>>, vector<5x256xbf16>
    %cst_26 = arith.constant dense<0.000000e+00> : vector<5x128xf32>
    %34 = tpu.matmul %33, %32, %cst_26 {dimension_numbers = #tpu.dot_dimension_numbers<[1], [0], [0], [1], [0, 0, 1, 1], [], []>} : vector<5x256xbf16>, vector<256x128xbf16>, vector<5x128xf32> -> vector<5x128xf32>
    %c0_27 = arith.constant 0 : index
    %c0_28 = arith.constant 0 : index
    %35 = vector.load %arg11[%c0_27, %c0_28] : memref<5x1xf32, #tpu.memory_space<vmem>>, vector<5x1xf32>
    %36 = vector.broadcast %35 : vector<5x1xf32> to vector<5x128xf32>
    %37 = arith.addf %34, %36 : vector<5x128xf32>
    %38 = arith.negf %37 : vector<5x128xf32>
    %39 = math.exp %38 : vector<5x128xf32>
    %cst_29 = arith.constant 1.000000e+00 : f32
    %40 = vector.broadcast %cst_29 : f32 to vector<5x128xf32>
    %41 = arith.addf %40, %39 : vector<5x128xf32>
    %42 = arith.divf %40, %41 : vector<5x128xf32>
    %c0_30 = arith.constant 0 : index
    %c0_31 = arith.constant 0 : index
    %43 = vector.load %arg12[%c0_30, %c0_31] : memref<5x128xf32, #tpu.memory_space<vmem>>, vector<5x128xf32>
    tpu.vector_store %arg12[%c0_30, %c0_31], %42 {strides = array<i32>} : memref<5x128xf32, #tpu.memory_space<vmem>>, vector<5x128xf32>,
    return
  }
  func.func @transform_0(%arg0: i32) -> (i32, i32) {
    %c0_i32 = arith.constant 0 : i32
    %c0_i32_0 = arith.constant 0 : i32
    return %c0_i32, %arg0 : i32, i32
  }
  func.func @transform_1(%arg0: i32) -> (i32, i32) {
    %c0_i32 = arith.constant 0 : i32
    %c0_i32_0 = arith.constant 0 : i32
    %c0_i32_1 = arith.constant 0 : i32
    return %c0_i32, %c0_i32_0 : i32, i32
  }
  func.func @transform_2(%arg0: i32) -> (i32, i32) {
    %c0_i32 = arith.constant 0 : i32
    %c0_i32_0 = arith.constant 0 : i32
    %c0_i32_1 = arith.constant 0 : i32
    return %c0_i32, %c0_i32_0 : i32, i32
  }
  func.func @transform_3(%arg0: i32) -> (i32, i32) {
    %c0_i32 = arith.constant 0 : i32
    %c0_i32_0 = arith.constant 0 : i32
    %c0_i32_1 = arith.constant 0 : i32
    return %c0_i32, %c0_i32_0 : i32, i32
  }
  func.func @transform_4(%arg0: i32) -> (i32, i32) {
    %c0_i32 = arith.constant 0 : i32
    %c0_i32_0 = arith.constant 0 : i32
    %c0_i32_1 = arith.constant 0 : i32
    return %c0_i32, %c0_i32_0 : i32, i32
  }
  func.func @transform_5(%arg0: i32) -> (i32, i32) {
    %c0_i32 = arith.constant 0 : i32
    %c0_i32_0 = arith.constant 0 : i32
    %c0_i32_1 = arith.constant 0 : i32
    return %c0_i32, %c0_i32_0 : i32, i32
  }
  func.func @transform_6(%arg0: i32) -> (i32, i32) {
    %c0_i32 = arith.constant 0 : i32
    %c0_i32_0 = arith.constant 0 : i32
    %c0_i32_1 = arith.constant 0 : i32
    return %c0_i32, %c0_i32_0 : i32, i32
  }
  func.func @transform_7(%arg0: i32) -> (i32, i32) {
    %c0_i32 = arith.constant 0 : i32
    %c0_i32_0 = arith.constant 0 : i32
    %c0_i32_1 = arith.constant 0 : i32
    return %c0_i32, %c0_i32_0 : i32, i32
  }
  func.func @transform_8(%arg0: i32) -> (i32, i32) {
    %c0_i32 = arith.constant 0 : i32
    %c0_i32_0 = arith.constant 0 : i32
    %c0_i32_1 = arith.constant 0 : i32
    return %c0_i32, %c0_i32_0 : i32, i32
  }
  func.func @transform_9(%arg0: i32) -> (i32, i32) {
    %c0_i32 = arith.constant 0 : i32
    %c0_i32_0 = arith.constant 0 : i32
    %c0_i32_1 = arith.constant 0 : i32
    return %c0_i32, %c0_i32_0 : i32, i32
  }
  func.func @transform_10(%arg0: i32) -> (i32, i32) {
    %c0_i32 = arith.constant 0 : i32
    %c0_i32_0 = arith.constant 0 : i32
    %c0_i32_1 = arith.constant 0 : i32
    return %c0_i32, %c0_i32_0 : i32, i32
  }
  func.func @transform_11(%arg0: i32) -> (i32, i32) {
    %c0_i32 = arith.constant 0 : i32
    %c0_i32_0 = arith.constant 0 : i32
    return %c0_i32, %arg0 : i32, i32
  }
}

</mosaic_0001>

<llo_original>
// kernel: tpu_custom_call.1
$region0: #{tpu_custom_call.1}
  #allocation0 [shape = 'u32[]', space=smem, size = 0x4, offset = 0x4, fixed_abs, tag = 'smem constant byte address 0x4 - core index']
  #allocation1 [shape = 'u32[144,128]{1,0:T(1,128)}', space=vmem, size = 0x12000, scoped, tag = 'internal scratch']
  %s0 = inlined_call_operand.vmem [shape: bf16[12,128], index: 0, kind: input, shape index: {}]
  %s1 = inlined_call_operand.vmem [shape: bf16[32,12], index: 1, kind: input, shape index: {}]
  %s2 = inlined_call_operand.vmem [shape: f32[32,1], index: 2, kind: input, shape index: {}]
  %s3 = inlined_call_operand.vmem [shape: bf16[64,32], index: 3, kind: input, shape index: {}]
  %s4 = inlined_call_operand.vmem [shape: f32[64,1], index: 4, kind: input, shape index: {}]
  %s5 = inlined_call_operand.vmem [shape: bf16[128,64], index: 5, kind: input, shape index: {}]
  %s6 = inlined_call_operand.vmem [shape: f32[128,1], index: 6, kind: input, shape index: {}]
  %s7 = inlined_call_operand.vmem [shape: bf16[256,128], index: 7, kind: input, shape index: {}]
  %s8 = inlined_call_operand.vmem [shape: f32[256,1], index: 8, kind: input, shape index: {}]
  %s9 = inlined_call_operand.vmem [shape: bf16[5,256], index: 9, kind: input, shape index: {}]
  %s10 = inlined_call_operand.vmem [shape: f32[5,1], index: 10, kind: input, shape index: {}]
  %s11 = inlined_call_operand.hbm [shape: f32[5,128], index: 11, kind: output, shape index: {}]
  %s12 = sld [smem:[#allocation0]]
  $region54: #{tpu_custom_call.1} parent=0
    _
  %s14 = ssub.s32 1, %s12
  %s15 = scalar_select 0, %s14, %s12
  $region1: #{tpu_custom_call.1} parent=0
    #allocation2 [shape = 'u8[4096]{0}', space=vmem, size = 0x1000, scoped, tag = 'output window, operand 0, single buffered']
    #allocation3 [shape = 's32[1]{0}', space=sflag, size = 0x4, scoped, tag = 'scoped memory for tpu_custom_call.1']
    %16 = vsyncpa [#allocation3], 0
    // Predicated region
    $region2: #{tpu_custom_call.1} parent=1 // pred_check
      _
    $region3: #{tpu_custom_call.1} parent=1 // pred_check_branch
      %18 = sbr.rel (0) target = $region5
    $region4: #{tpu_custom_call.1} parent=1 // pred_region
      _
    $region5: #{tpu_custom_call.1} parent=1 // pred_fallthru
      _
    // Predicated region
    $region6: #{tpu_custom_call.1} parent=1 // pred_check
      _
    $region7: #{tpu_custom_call.1} parent=1 // pred_check_branch
      %20 = sbr.rel (0) target = $region9
    $region8: #{tpu_custom_call.1} parent=1 // pred_region
      _
    $region9: #{tpu_custom_call.1} parent=1 // pred_fallthru
      _
    // Predicated region
    $region10: #{tpu_custom_call.1} parent=1 // pred_check
      _
    $region11: #{tpu_custom_call.1} parent=1 // pred_check_branch
      %22 = sbr.rel (0) target = $region13
    $region12: #{tpu_custom_call.1} parent=1 // pred_region
      _
    $region13: #{tpu_custom_call.1} parent=1 // pred_fallthru
      _
    // Predicated region
    $region14: #{tpu_custom_call.1} parent=1 // pred_check
      _
    $region15: #{tpu_custom_call.1} parent=1 // pred_check_branch
      %24 = sbr.rel (0) target = $region17
    $region16: #{tpu_custom_call.1} parent=1 // pred_region
      _
    $region17: #{tpu_custom_call.1} parent=1 // pred_fallthru
      _
    // Predicated region
    $region18: #{tpu_custom_call.1} parent=1 // pred_check
      _
    $region19: #{tpu_custom_call.1} parent=1 // pred_check_branch
      %26 = sbr.rel (0) target = $region21
    $region20: #{tpu_custom_call.1} parent=1 // pred_region
      _
    $region21: #{tpu_custom_call.1} parent=1 // pred_fallthru
      _
    // Predicated region
    $region22: #{tpu_custom_call.1} parent=1 // pred_check
      _
    $region23: #{tpu_custom_call.1} parent=1 // pred_check_branch
      %28 = sbr.rel (0) target = $region25
    $region24: #{tpu_custom_call.1} parent=1 // pred_region
      _
    $region25: #{tpu_custom_call.1} parent=1 // pred_fallthru
      _
    // Predicated region
    $region26: #{tpu_custom_call.1} parent=1 // pred_check
      _
    $region27: #{tpu_custom_call.1} parent=1 // pred_check_branch
      %30 = sbr.rel (0) target = $region29
    $region28: #{tpu_custom_call.1} parent=1 // pred_region
      _
    $region29: #{tpu_custom_call.1} parent=1 // pred_fallthru
      _
    // Predicated region
    $region30: #{tpu_custom_call.1} parent=1 // pred_check
      _
    $region31: #{tpu_custom_call.1} parent=1 // pred_check_branch
      %32 = sbr.rel (0) target = $region33
    $region32: #{tpu_custom_call.1} parent=1 // pred_region
      _
    $region33: #{tpu_custom_call.1} parent=1 // pred_fallthru
      _
    // Predicated region
    $region34: #{tpu_custom_call.1} parent=1 // pred_check
      _
    $region35: #{tpu_custom_call.1} parent=1 // pred_check_branch
      %34 = sbr.rel (0) target = $region37
    $region36: #{tpu_custom_call.1} parent=1 // pred_region
      _
    $region37: #{tpu_custom_call.1} parent=1 // pred_fallthru
      _
    // Predicated region
    $region38: #{tpu_custom_call.1} parent=1 // pred_check
      _
    $region39: #{tpu_custom_call.1} parent=1 // pred_check_branch
      %36 = sbr.rel (0) target = $region41
    $region40: #{tpu_custom_call.1} parent=1 // pred_region
      _
    $region41: #{tpu_custom_call.1} parent=1 // pred_fallthru
      _
    // Predicated region
    $region42: #{tpu_custom_call.1} parent=1 // pred_check
      _
    $region43: #{tpu_custom_call.1} parent=1 // pred_check_branch
      %38 = sbr.rel (0) target = $region45
    $region44: #{tpu_custom_call.1} parent=1 // pred_region
      _
    $region45: #{tpu_custom_call.1} parent=1 // pred_fallthru
      _
    %v40 = vld [vmem:[%s0] sm:$0xf]
    %v41 = vld [vmem:[%s0 + $0x4] sm:$0x3]
    %v42 = vld [vmem:[%s1] sm:$0xf]
    %v43 = vld [vmem:[%s1 + $0x4] sm:$0xf]
    %v44 = vld [vmem:[%s1 + $0x8] sm:$0xf]
    %v45 = vld [vmem:[%s1 + $0xc] sm:$0xf]
    %v46 = vld [vmem:[%s2] sm:$0xff]
    %v47 = vld [vmem:[%s2 + $0x8] sm:$0xff]
    %v48 = vld [vmem:[%s2 + $0x10] sm:$0xff]
    %v49 = vld [vmem:[%s2 + $0x18] sm:$0xff]
    %51 = vset.pattern.permute.xlu0 0
    %52 = vperm.xlu0 %51, %v46
    %v53 = vpop.permute.xlu0 %52
    %56 = vset.pattern.permute.xlu0 0
    %57 = vperm.xlu0 %56, %v47
    %v58 = vpop.permute.xlu0 %57
    %61 = vset.pattern.permute.xlu0 0
    %62 = vperm.xlu0 %61, %v48
    %v63 = vpop.permute.xlu0 %62
    %66 = vset.pattern.permute.xlu0 0
    %67 = vperm.xlu0 %66, %v49
    %v68 = vpop.permute.xlu0 %67
    %v74 = vunpack.c.l.b16 %v42
    %v75 = vunpack.c.l.b16 %v43
    %v76 = vunpack.c.l.b16 %v44
    %v77 = vunpack.c.l.b16 %v45
    %v78 = vpack.c.b16 %v75, %v74
    %v79 = vpack.c.b16 %v77, %v76
    %v82 = vunpack.c.l.b16 %v40
    %v83 = vunpack.c.l.b16 %v41
    %v84 = vpack.c.b16 %v83, %v82
    %vm85 = vcmask 97280
    %v87 = vsel %vm85, %v78, 0
    %v90 = vsel %vm85, %v79, 0
    %vm92 = vcmask 1045504
    %v94 = vsel %vm92, %v84, 0
    %96 = vmatprep.subr.bf16.mxu0 0
    %97 = vmatpush1.bf16.msra.mxu0 0
    %98 = vmatprep.subr.bf16.mxu0 0
    %99 = vmatpush1.bf16.msra.mxu0 0
    %100 = vmatprep.subr.bf16.mxu0 0
    %101 = vmatpush1.bf16.msra.mxu0 0
    %102 = vmatprep.subr.bf16.mxu0 0
    %103 = vmatpush1.bf16.msra.mxu0 0
    %104 = vmatprep.subr.bf16.mxu0 0
    %105 = vmatpush1.bf16.msra.mxu0 0
    %106 = vmatprep.subr.bf16.mxu0 0
    %107 = vmatpush1.bf16.msra.mxu0 0
    %108 = vmatprep.subr.bf16.mxu0 0
    %109 = vmatpush1.bf16.msra.mxu0 0
    %110 = vmatprep.subr.bf16.mxu0 0
    %111 = vmatpush1.bf16.msra.mxu0 %v94
    %112 = vmatprep.subr.bf16.mxu0 0
    %113 = vmatpush2.bf16.msra.mxu0 0
    %114 = vmatprep.subr.bf16.mxu0 0
    %115 = vmatpush2.bf16.msra.mxu0 0
    %116 = vmatprep.subr.bf16.mxu0 0
    %117 = vmatpush2.bf16.msra.mxu0 0
    %118 = vmatprep.subr.bf16.mxu0 0
    %119 = vmatpush2.bf16.msra.mxu0 0
    %120 = vmatprep.subr.bf16.mxu0 0
    %121 = vmatpush2.bf16.msra.mxu0 0
    %122 = vmatprep.subr.bf16.mxu0 0
    %123 = vmatpush2.bf16.msra.mxu0 0
    %124 = vmatprep.subr.bf16.mxu0 0
    %125 = vmatpush2.bf16.msra.mxu0 0
    %126 = vmatprep.subr.bf16.mxu0 0
    %127 = vmatpush2.bf16.msra.mxu0 0
    %128 = vmatprep.mubr.bf16.mxu0 0
    %129 = vmatmul.mubr.bf16.gmra.mxu0 %v87
    %v130 = vpop.f32.mrf.mxu0
    %v131 = vadd.f32 %v53, %v130
    %v132 = vpop.f32.mrf.mxu0
    %v133 = vpop.f32.mrf.mxu0
    %v134 = vadd.f32 %v58, %v133
    %v135 = vpop.f32.mrf.mxu0
    %136 = vmatprep.mubr.bf16.mxu0 0
    %137 = vmatmul.mubr.bf16.gmra.mxu0 %v90
    %v138 = vpop.f32.mrf.mxu0
    %v139 = vadd.f32 %v63, %v138
    %v140 = vpop.f32.mrf.mxu0
    %v141 = vpop.f32.mrf.mxu0
    %v142 = vadd.f32 %v68, %v141
    %v143 = vpop.f32.mrf.mxu0
    %144 = vdwg.mxu0
    %v145 = vmax.f32 %v131, 0.0
    %v146 = vmax.f32 %v134, 0.0
    %v147 = vmax.f32 %v139, 0.0
    %v148 = vmax.f32 %v142, 0.0
    %v149 = vpack.c.bf16 %v146, %v145
    %v150 = vpack.c.bf16 %v148, %v147
    %v151 = vld [vmem:[%s3] sm:$0xf]
    %v152 = vld [vmem:[%s3 + $0x4] sm:$0xf]
    %v153 = vld [vmem:[%s3 + $0x8] sm:$0xf]
    %v154 = vld [vmem:[%s3 + $0xc] sm:$0xf]
    %v155 = vld [vmem:[%s3 + $0x10] sm:$0xf]
    %v156 = vld [vmem:[%s3 + $0x14] sm:$0xf]
    %v157 = vld [vmem:[%s3 + $0x18] sm:$0xf]
    %v158 = vld [vmem:[%s3 + $0x1c] sm:$0xf]
    %v159 = vld [vmem:[%s4] sm:$0xff]
    %v160 = vld [vmem:[%s4 + $0x8] sm:$0xff]
    %v161 = vld [vmem:[%s4 + $0x10] sm:$0xff]
    %v162 = vld [vmem:[%s4 + $0x18] sm:$0xff]
    %v163 = vld [vmem:[%s4 + $0x20] sm:$0xff]
    %v164 = vld [vmem:[%s4 + $0x28] sm:$0xff]
    %v165 = vld [vmem:[%s4 + $0x30] sm:$0xff]
    %v166 = vld [vmem:[%s4 + $0x38] sm:$0xff]
    %168 = vset.pattern.permute.xlu0 0
    %169 = vperm.xlu0 %168, %v159
    %v170 = vpop.permute.xlu0 %169
    %173 = vset.pattern.permute.xlu0 0
    %174 = vperm.xlu0 %173, %v160
    %v175 = vpop.permute.xlu0 %174
    %178 = vset.pattern.permute.xlu0 0
    %179 = vperm.xlu0 %178, %v161
    %v180 = vpop.permute.xlu0 %179
    %183 = vset.pattern.permute.xlu0 0
    %184 = vperm.xlu0 %183, %v162
    %v185 = vpop.permute.xlu0 %184
    %188 = vset.pattern.permute.xlu0 0
    %189 = vperm.xlu0 %188, %v163
    %v190 = vpop.permute.xlu0 %189
    %193 = vset.pattern.permute.xlu0 0
    %194 = vperm.xlu0 %193, %v164
    %v195 = vpop.permute.xlu0 %194
    %198 = vset.pattern.permute.xlu0 0
    %199 = vperm.xlu0 %198, %v165
    %v200 = vpop.permute.xlu0 %199
    %203 = vset.pattern.permute.xlu0 0
    %204 = vperm.xlu0 %203, %v166
    %v205 = vpop.permute.xlu0 %204
    %v215 = vunpack.c.l.b16 %v151
    %v216 = vunpack.c.l.b16 %v152
    %v217 = vunpack.c.l.b16 %v153
    %v218 = vunpack.c.l.b16 %v154
    %v219 = vunpack.c.l.b16 %v155
    %v220 = vunpack.c.l.b16 %v156
    %v221 = vunpack.c.l.b16 %v157
    %v222 = vunpack.c.l.b16 %v158
    %v223 = vpack.c.b16 %v216, %v215
    %v224 = vpack.c.b16 %v218, %v217
    %v225 = vpack.c.b16 %v220, %v219
    %v226 = vpack.c.b16 %v222, %v221
    %vm227 = vcmask 261120
    %v229 = vsel %vm227, %v223, 0
    %v232 = vsel %vm227, %v224, 0
    %v235 = vsel %vm227, %v225, 0
    %v238 = vsel %vm227, %v226, 0
    %240 = vmatprep.subr.bf16.mxu0 0
    %241 = vmatpush1.bf16.msra.mxu0 0
    %242 = vmatprep.subr.bf16.mxu0 0
    %243 = vmatpush1.bf16.msra.mxu0 0
    %244 = vmatprep.subr.bf16.mxu0 0
    %245 = vmatpush1.bf16.msra.mxu0 0
    %246 = vmatprep.subr.bf16.mxu0 0
    %247 = vmatpush1.bf16.msra.mxu0 0
    %248 = vmatprep.subr.bf16.mxu0 0
    %249 = vmatpush1.bf16.msra.mxu0 0
    %250 = vmatprep.subr.bf16.mxu0 0
    %251 = vmatpush1.bf16.msra.mxu0 0
    %252 = vmatprep.subr.bf16.mxu0 0
    %253 = vmatpush1.bf16.msra.mxu0 %v150
    %254 = vmatprep.subr.bf16.mxu0 0
    %255 = vmatpush1.bf16.msra.mxu0 %v149
    %256 = vmatprep.subr.bf16.mxu0 0
    %257 = vmatpush2.bf16.msra.mxu0 0
    %258 = vmatprep.subr.bf16.mxu0 0
    %259 = vmatpush2.bf16.msra.mxu0 0
    %260 = vmatprep.subr.bf16.mxu0 0
    %261 = vmatpush2.bf16.msra.mxu0 0
    %262 = vmatprep.subr.bf16.mxu0 0
    %263 = vmatpush2.bf16.msra.mxu0 0
    %264 = vmatprep.subr.bf16.mxu0 0
    %265 = vmatpush2.bf16.msra.mxu0 0
    %266 = vmatprep.subr.bf16.mxu0 0
    %267 = vmatpush2.bf16.msra.mxu0 0
    %268 = vmatprep.subr.bf16.mxu0 0
    %269 = vmatpush2.bf16.msra.mxu0 0
    %270 = vmatprep.subr.bf16.mxu0 0
    %271 = vmatpush2.bf16.msra.mxu0 0
    %272 = vmatprep.mubr.bf16.mxu0 0
    %273 = vmatmul.mubr.bf16.gmra.mxu0 %v229
    %v274 = vpop.f32.mrf.mxu0
    %v275 = vadd.f32 %v170, %v274
    %v276 = vpop.f32.mrf.mxu0
    %v277 = vpop.f32.mrf.mxu0
    %v278 = vadd.f32 %v175, %v277
    %v279 = vpop.f32.mrf.mxu0
    %280 = vmatprep.mubr.bf16.mxu0 0
    %281 = vmatmul.mubr.bf16.gmra.mxu0 %v232
    %v282 = vpop.f32.mrf.mxu0
    %v283 = vadd.f32 %v180, %v282
    %v284 = vpop.f32.mrf.mxu0
    %v285 = vpop.f32.mrf.mxu0
    %v286 = vadd.f32 %v185, %v285
    %v287 = vpop.f32.mrf.mxu0
    %288 = vmatprep.mubr.bf16.mxu0 0
    %289 = vmatmul.mubr.bf16.gmra.mxu0 %v235
    %v290 = vpop.f32.mrf.mxu0
    %v291 = vadd.f32 %v190, %v290
    %v292 = vpop.f32.mrf.mxu0
    %v293 = vpop.f32.mrf.mxu0
    %v294 = vadd.f32 %v195, %v293
    %v295 = vpop.f32.mrf.mxu0
    %296 = vmatprep.mubr.bf16.mxu0 0
    %297 = vmatmul.mubr.bf16.gmra.mxu0 %v238
    %v298 = vpop.f32.mrf.mxu0
    %v299 = vadd.f32 %v200, %v298
    %v300 = vpop.f32.mrf.mxu0
    %v301 = vpop.f32.mrf.mxu0
    %v302 = vadd.f32 %v205, %v301
    %v303 = vpop.f32.mrf.mxu0
    %304 = vdwg.mxu0
    %v305 = vmax.f32 %v275, 0.0
    %v306 = vmax.f32 %v278, 0.0
    %v307 = vmax.f32 %v283, 0.0
    %v308 = vmax.f32 %v286, 0.0
    %v309 = vmax.f32 %v291, 0.0
    %v310 = vmax.f32 %v294, 0.0
    %v311 = vmax.f32 %v299, 0.0
    %v312 = vmax.f32 %v302, 0.0
    %v313 = vpack.c.bf16 %v306, %v305
    %v314 = vpack.c.bf16 %v308, %v307
    %v315 = vpack.c.bf16 %v310, %v309
    %v316 = vpack.c.bf16 %v312, %v311
    %v317 = vld [vmem:[%s5] sm:$0xf]
    %v318 = vld [vmem:[%s5 + $0x4] sm:$0xf]
    %v319 = vld [vmem:[%s5 + $0x8] sm:$0xf]
    %v320 = vld [vmem:[%s5 + $0xc] sm:$0xf]
    %v321 = vld [vmem:[%s5 + $0x10] sm:$0xf]
    %v322 = vld [vmem:[%s5 + $0x14] sm:$0xf]
    %v323 = vld [vmem:[%s5 + $0x18] sm:$0xf]
    %v324 = vld [vmem:[%s5 + $0x1c] sm:$0xf]
    %v325 = vld [vmem:[%s5 + $0x20] sm:$0xf]
    %v326 = vld [vmem:[%s5 + $0x24] sm:$0xf]
    %v327 = vld [vmem:[%s5 + $0x28] sm:$0xf]
    %v328 = vld [vmem:[%s5 + $0x2c] sm:$0xf]
    %v329 = vld [vmem:[%s5 + $0x30] sm:$0xf]
    %v330 = vld [vmem:[%s5 + $0x34] sm:$0xf]
    %v331 = vld [vmem:[%s5 + $0x38] sm:$0xf]
    %v332 = vld [vmem:[%s5 + $0x3c] sm:$0xf]
    %v333 = vld [vmem:[%s6] sm:$0xff]
    %v334 = vld [vmem:[%s6 + $0x8] sm:$0xff]
    %v335 = vld [vmem:[%s6 + $0x10] sm:$0xff]
    %v336 = vld [vmem:[%s6 + $0x18] sm:$0xff]
    %v337 = vld [vmem:[%s6 + $0x20] sm:$0xff]
    %v338 = vld [vmem:[%s6 + $0x28] sm:$0xff]
    %v339 = vld [vmem:[%s6 + $0x30] sm:$0xff]
    %v340 = vld [vmem:[%s6 + $0x38] sm:$0xff]
    %v341 = vld [vmem:[%s6 + $0x40] sm:$0xff]
    %v342 = vld [vmem:[%s6 + $0x48] sm:$0xff]
    %v343 = vld [vmem:[%s6 + $0x50] sm:$0xff]
    %v344 = vld [vmem:[%s6 + $0x58] sm:$0xff]
    %v345 = vld [vmem:[%s6 + $0x60] sm:$0xff]
    %v346 = vld [vmem:[%s6 + $0x68] sm:$0xff]
    %v347 = vld [vmem:[%s6 + $0x70] sm:$0xff]
    %v348 = vld [vmem:[%s6 + $0x78] sm:$0xff]
    %350 = vset.pattern.permute.xlu0 0
    %351 = vperm.xlu0 %350, %v333
    %v352 = vpop.permute.xlu0 %351
    %355 = vset.pattern.permute.xlu0 0
    %356 = vperm.xlu0 %355, %v334
    %v357 = vpop.permute.xlu0 %356
    %360 = vset.pattern.permute.xlu0 0
    %361 = vperm.xlu0 %360, %v335
    %v362 = vpop.permute.xlu0 %361
    %365 = vset.pattern.permute.xlu0 0
    %366 = vperm.xlu0 %365, %v336
    %v367 = vpop.permute.xlu0 %366
    %370 = vset.pattern.permute.xlu0 0
    %371 = vperm.xlu0 %370, %v337
    %v372 = vpop.permute.xlu0 %371
    %375 = vset.pattern.permute.xlu0 0
    %376 = vperm.xlu0 %375, %v338
    %v377 = vpop.permute.xlu0 %376
    %380 = vset.pattern.permute.xlu0 0
    %381 = vperm.xlu0 %380, %v339
    %v382 = vpop.permute.xlu0 %381
    %385 = vset.pattern.permute.xlu0 0
    %386 = vperm.xlu0 %385, %v340
    %v387 = vpop.permute.xlu0 %386
    %390 = vset.pattern.permute.xlu0 0
    %391 = vperm.xlu0 %390, %v341
    %v392 = vpop.permute.xlu0 %391
    %395 = vset.pattern.permute.xlu0 0
    %396 = vperm.xlu0 %395, %v342
    %v397 = vpop.permute.xlu0 %396
    %400 = vset.pattern.permute.xlu0 0
    %401 = vperm.xlu0 %400, %v343
    %v402 = vpop.permute.xlu0 %401
    %405 = vset.pattern.permute.xlu0 0
    %406 = vperm.xlu0 %405, %v344
    %v407 = vpop.permute.xlu0 %406
    %410 = vset.pattern.permute.xlu0 0
    %411 = vperm.xlu0 %410, %v345
    %v412 = vpop.permute.xlu0 %411
    %415 = vset.pattern.permute.xlu0 0
    %416 = vperm.xlu0 %415, %v346
    %v417 = vpop.permute.xlu0 %416
    %420 = vset.pattern.permute.xlu0 0
    %421 = vperm.xlu0 %420, %v347
    %v422 = vpop.permute.xlu0 %421
    %425 = vset.pattern.permute.xlu0 0
    %426 = vperm.xlu0 %425, %v348
    %v427 = vpop.permute.xlu0 %426
    %v445 = vunpack.c.l.b16 %v317
    %v446 = vunpack.c.l.b16 %v318
    %v447 = vunpack.c.l.b16 %v319
    %v448 = vunpack.c.l.b16 %v320
    %v449 = vunpack.c.l.b16 %v321
    %v450 = vunpack.c.l.b16 %v322
    %v451 = vunpack.c.l.b16 %v323
    %v452 = vunpack.c.l.b16 %v324
    %v453 = vunpack.c.l.b16 %v325
    %v454 = vunpack.c.l.b16 %v326
    %v455 = vunpack.c.l.b16 %v327
    %v456 = vunpack.c.l.b16 %v328
    %v457 = vunpack.c.l.b16 %v329
    %v458 = vunpack.c.l.b16 %v330
    %v459 = vunpack.c.l.b16 %v331
    %v460 = vunpack.c.l.b16 %v332
    %v461 = vpack.c.b16 %v446, %v445
    %v462 = vpack.c.b16 %v448, %v447
    %v463 = vpack.c.b16 %v450, %v449
    %v464 = vpack.c.b16 %v452, %v451
    %v465 = vpack.c.b16 %v454, %v453
    %v466 = vpack.c.b16 %v456, %v455
    %v467 = vpack.c.b16 %v458, %v457
    %v468 = vpack.c.b16 %v460, %v459
    %vm469 = vcmask 523264
    %v471 = vsel %vm469, %v461, 0
    %v474 = vsel %vm469, %v462, 0
    %v477 = vsel %vm469, %v463, 0
    %v480 = vsel %vm469, %v464, 0
    %v483 = vsel %vm469, %v465, 0
    %v486 = vsel %vm469, %v466, 0
    %v489 = vsel %vm469, %v467, 0
    %v492 = vsel %vm469, %v468, 0
    %494 = vmatprep.subr.bf16.mxu0 0
    %495 = vmatpush1.bf16.msra.mxu0 0
    %496 = vmatprep.subr.bf16.mxu0 0
    %497 = vmatpush1.bf16.msra.mxu0 0
    %498 = vmatprep.subr.bf16.mxu0 0
    %499 = vmatpush1.bf16.msra.mxu0 0
    %500 = vmatprep.subr.bf16.mxu0 0
    %501 = vmatpush1.bf16.msra.mxu0 0
    %502 = vmatprep.subr.bf16.mxu0 0
    %503 = vmatpush1.bf16.msra.mxu0 %v316
    %504 = vmatprep.subr.bf16.mxu0 0
    %505 = vmatpush1.bf16.msra.mxu0 %v315
    %506 = vmatprep.subr.bf16.mxu0 0
    %507 = vmatpush1.bf16.msra.mxu0 %v314
    %508 = vmatprep.subr.bf16.mxu0 0
    %509 = vmatpush1.bf16.msra.mxu0 %v313
    %510 = vmatprep.subr.bf16.mxu0 0
    %511 = vmatpush2.bf16.msra.mxu0 0
    %512 = vmatprep.subr.bf16.mxu0 0
    %513 = vmatpush2.bf16.msra.mxu0 0
    %514 = vmatprep.subr.bf16.mxu0 0
    %515 = vmatpush2.bf16.msra.mxu0 0
    %516 = vmatprep.subr.bf16.mxu0 0
    %517 = vmatpush2.bf16.msra.mxu0 0
    %518 = vmatprep.subr.bf16.mxu0 0
    %519 = vmatpush2.bf16.msra.mxu0 0
    %520 = vmatprep.subr.bf16.mxu0 0
    %521 = vmatpush2.bf16.msra.mxu0 0
    %522 = vmatprep.subr.bf16.mxu0 0
    %523 = vmatpush2.bf16.msra.mxu0 0
    %524 = vmatprep.subr.bf16.mxu0 0
    %525 = vmatpush2.bf16.msra.mxu0 0
    %526 = vmatprep.mubr.bf16.mxu0 0
    %527 = vmatmul.mubr.bf16.gmra.mxu0 %v471
    %v528 = vpop.f32.mrf.mxu0
    %v529 = vadd.f32 %v352, %v528
    %v530 = vpop.f32.mrf.mxu0
    %v531 = vpop.f32.mrf.mxu0
    %v532 = vadd.f32 %v357, %v531
    %v533 = vpop.f32.mrf.mxu0
    %534 = vmatprep.mubr.bf16.mxu0 0
    %535 = vmatmul.mubr.bf16.gmra.mxu0 %v474
    %v536 = vpop.f32.mrf.mxu0
    %v537 = vadd.f32 %v362, %v536
    %v538 = vpop.f32.mrf.mxu0
    %v539 = vpop.f32.mrf.mxu0
    %v540 = vadd.f32 %v367, %v539
    %v541 = vpop.f32.mrf.mxu0
    %542 = vmatprep.mubr.bf16.mxu0 0
    %543 = vmatmul.mubr.bf16.gmra.mxu0 %v477
    %v544 = vpop.f32.mrf.mxu0
    %v545 = vadd.f32 %v372, %v544
    %v546 = vpop.f32.mrf.mxu0
    %v547 = vpop.f32.mrf.mxu0
    %v548 = vadd.f32 %v377, %v547
    %v549 = vpop.f32.mrf.mxu0
    %550 = vmatprep.mubr.bf16.mxu0 0
    %551 = vmatmul.mubr.bf16.gmra.mxu0 %v480
    %v552 = vpop.f32.mrf.mxu0
    %v553 = vadd.f32 %v382, %v552
    %v554 = vpop.f32.mrf.mxu0
    %v555 = vpop.f32.mrf.mxu0
    %v556 = vadd.f32 %v387, %v555
    %v557 = vpop.f32.mrf.mxu0
    %558 = vmatprep.mubr.bf16.mxu0 0
    %559 = vmatmul.mubr.bf16.gmra.mxu0 %v483
    %v560 = vpop.f32.mrf.mxu0
    %v561 = vadd.f32 %v392, %v560
    %v562 = vpop.f32.mrf.mxu0
    %v563 = vpop.f32.mrf.mxu0
    %v564 = vadd.f32 %v397, %v563
    %v565 = vpop.f32.mrf.mxu0
    %566 = vmatprep.mubr.bf16.mxu0 0
    %567 = vmatmul.mubr.bf16.gmra.mxu0 %v486
    %v568 = vpop.f32.mrf.mxu0
    %v569 = vadd.f32 %v402, %v568
    %v570 = vpop.f32.mrf.mxu0
    %v571 = vpop.f32.mrf.mxu0
    %v572 = vadd.f32 %v407, %v571
    %v573 = vpop.f32.mrf.mxu0
    %574 = vmatprep.mubr.bf16.mxu0 0
    %575 = vmatmul.mubr.bf16.gmra.mxu0 %v489
    %v576 = vpop.f32.mrf.mxu0
    %v577 = vadd.f32 %v412, %v576
    %v578 = vpop.f32.mrf.mxu0
    %v579 = vpop.f32.mrf.mxu0
    %v580 = vadd.f32 %v417, %v579
    %v581 = vpop.f32.mrf.mxu0
    %582 = vmatprep.mubr.bf16.mxu0 0
    %583 = vmatmul.mubr.bf16.gmra.mxu0 %v492
    %v584 = vpop.f32.mrf.mxu0
    %v585 = vadd.f32 %v422, %v584
    %v586 = vpop.f32.mrf.mxu0
    %v587 = vpop.f32.mrf.mxu0
    %v588 = vadd.f32 %v427, %v587
    %v589 = vpop.f32.mrf.mxu0
    %590 = vdwg.mxu0
    %v591 = vmax.f32 %v529, 0.0
    %v592 = vmax.f32 %v532, 0.0
    %v593 = vmax.f32 %v537, 0.0
    %v594 = vmax.f32 %v540, 0.0
    %v595 = vmax.f32 %v545, 0.0
    %v596 = vmax.f32 %v548, 0.0
    %v597 = vmax.f32 %v553, 0.0
    %v598 = vmax.f32 %v556, 0.0
    %v599 = vmax.f32 %v561, 0.0
    %v600 = vmax.f32 %v564, 0.0
    %v601 = vmax.f32 %v569, 0.0
    %v602 = vmax.f32 %v572, 0.0
    %v603 = vmax.f32 %v577, 0.0
    %v604 = vmax.f32 %v580, 0.0
    %v605 = vmax.f32 %v585, 0.0
    %v606 = vmax.f32 %v588, 0.0
    %v607 = vpack.c.bf16 %v592, %v591
    %v608 = vpack.c.bf16 %v594, %v593
    %v609 = vpack.c.bf16 %v596, %v595
    %v610 = vpack.c.bf16 %v598, %v597
    %v611 = vpack.c.bf16 %v600, %v599
    %v612 = vpack.c.bf16 %v602, %v601
    %v613 = vpack.c.bf16 %v604, %v603
    %v614 = vpack.c.bf16 %v606, %v605
    %v615 = vld [vmem:[%s7] sm:$0xf]
    %v616 = vld [vmem:[%s7 + $0x4] sm:$0xf]
    %v617 = vld [vmem:[%s7 + $0x8] sm:$0xf]
    %v618 = vld [vmem:[%s7 + $0xc] sm:$0xf]
    %v619 = vld [vmem:[%s7 + $0x10] sm:$0xf]
    %v620 = vld [vmem:[%s7 + $0x14] sm:$0xf]
    %v621 = vld [vmem:[%s7 + $0x18] sm:$0xf]
    %v622 = vld [vmem:[%s7 + $0x1c] sm:$0xf]
    %v623 = vld [vmem:[%s7 + $0x20] sm:$0xf]
    %v624 = vld [vmem:[%s7 + $0x24] sm:$0xf]
    %v625 = vld [vmem:[%s7 + $0x28] sm:$0xf]
    %v626 = vld [vmem:[%s7 + $0x2c] sm:$0xf]
    %v627 = vld [vmem:[%s7 + $0x30] sm:$0xf]
    %v628 = vld [vmem:[%s7 + $0x34] sm:$0xf]
    %v629 = vld [vmem:[%s7 + $0x38] sm:$0xf]
    %v630 = vld [vmem:[%s7 + $0x3c] sm:$0xf]
    %v631 = vld [vmem:[%s7 + $0x40] sm:$0xf]
    %v632 = vld [vmem:[%s7 + $0x44] sm:$0xf]
    %v633 = vld [vmem:[%s7 + $0x48] sm:$0xf]
    %v634 = vld [vmem:[%s7 + $0x4c] sm:$0xf]
    %v635 = vld [vmem:[%s7 + $0x50] sm:$0xf]
    %v636 = vld [vmem:[%s7 + $0x54] sm:$0xf]
    %v637 = vld [vmem:[%s7 + $0x58] sm:$0xf]
    %v638 = vld [vmem:[%s7 + $0x5c] sm:$0xf]
    %v639 = vld [vmem:[%s7 + $0x60] sm:$0xf]
    %v640 = vld [vmem:[%s7 + $0x64] sm:$0xf]
    %v641 = vld [vmem:[%s7 + $0x68] sm:$0xf]
    %v642 = vld [vmem:[%s7 + $0x6c] sm:$0xf]
    %v643 = vld [vmem:[%s7 + $0x70] sm:$0xf]
    %v644 = vld [vmem:[%s7 + $0x74] sm:$0xf]
    %v645 = vld [vmem:[%s7 + $0x78] sm:$0xf]
    %v646 = vld [vmem:[%s7 + $0x7c] sm:$0xf]
    %v647 = vld [vmem:[%s8] sm:$0xff]
    %v648 = vld [vmem:[%s8 + $0x8] sm:$0xff]
    %v649 = vld [vmem:[%s8 + $0x10] sm:$0xff]
    %v650 = vld [vmem:[%s8 + $0x18] sm:$0xff]
    %v651 = vld [vmem:[%s8 + $0x20] sm:$0xff]
    %v652 = vld [vmem:[%s8 + $0x28] sm:$0xff]
    %v653 = vld [vmem:[%s8 + $0x30] sm:$0xff]
    %v654 = vld [vmem:[%s8 + $0x38] sm:$0xff]
    %v655 = vld [vmem:[%s8 + $0x40] sm:$0xff]
    %v656 = vld [vmem:[%s8 + $0x48] sm:$0xff]
    %v657 = vld [vmem:[%s8 + $0x50] sm:$0xff]
    %v658 = vld [vmem:[%s8 + $0x58] sm:$0xff]
    %v659 = vld [vmem:[%s8 + $0x60] sm:$0xff]
    %v660 = vld [vmem:[%s8 + $0x68] sm:$0xff]
    %v661 = vld [vmem:[%s8 + $0x70] sm:$0xff]
    %v662 = vld [vmem:[%s8 + $0x78] sm:$0xff]
    %v663 = vld [vmem:[%s8 + $0x80] sm:$0xff]
    %v664 = vld [vmem:[%s8 + $0x88] sm:$0xff]
    %v665 = vld [vmem:[%s8 + $0x90] sm:$0xff]
    %v666 = vld [vmem:[%s8 + $0x98] sm:$0xff]
    %v667 = vld [vmem:[%s8 + $0xa0] sm:$0xff]
    %v668 = vld [vmem:[%s8 + $0xa8] sm:$0xff]
    %v669 = vld [vmem:[%s8 + $0xb0] sm:$0xff]
    %v670 = vld [vmem:[%s8 + $0xb8] sm:$0xff]
    %v671 = vld [vmem:[%s8 + $0xc0] sm:$0xff]
    %v672 = vld [vmem:[%s8 + $0xc8] sm:$0xff]
    %v673 = vld [vmem:[%s8 + $0xd0] sm:$0xff]
    %v674 = vld [vmem:[%s8 + $0xd8] sm:$0xff]
    %v675 = vld [vmem:[%s8 + $0xe0] sm:$0xff]
    %v676 = vld [vmem:[%s8 + $0xe8] sm:$0xff]
    %v677 = vld [vmem:[%s8 + $0xf0] sm:$0xff]
    %v678 = vld [vmem:[%s8 + $0xf8] sm:$0xff]
    %680 = vset.pattern.permute.xlu0 0
    %681 = vperm.xlu0 %680, %v647
    %v682 = vpop.permute.xlu0 %681
    %685 = vset.pattern.permute.xlu0 0
    %686 = vperm.xlu0 %685, %v648
    %v687 = vpop.permute.xlu0 %686
    %690 = vset.pattern.permute.xlu0 0
    %691 = vperm.xlu0 %690, %v649
    %v692 = vpop.permute.xlu0 %691
    %695 = vset.pattern.permute.xlu0 0
    %696 = vperm.xlu0 %695, %v650
    %v697 = vpop.permute.xlu0 %696
    %700 = vset.pattern.permute.xlu0 0
    %701 = vperm.xlu0 %700, %v651
    %v702 = vpop.permute.xlu0 %701
    %705 = vset.pattern.permute.xlu0 0
    %706 = vperm.xlu0 %705, %v652
    %v707 = vpop.permute.xlu0 %706
    %710 = vset.pattern.permute.xlu0 0
    %711 = vperm.xlu0 %710, %v653
    %v712 = vpop.permute.xlu0 %711
    %715 = vset.pattern.permute.xlu0 0
    %716 = vperm.xlu0 %715, %v654
    %v717 = vpop.permute.xlu0 %716
    %720 = vset.pattern.permute.xlu0 0
    %721 = vperm.xlu0 %720, %v655
    %v722 = vpop.permute.xlu0 %721
    %725 = vset.pattern.permute.xlu0 0
    %726 = vperm.xlu0 %725, %v656
    %v727 = vpop.permute.xlu0 %726
    %730 = vset.pattern.permute.xlu0 0
    %731 = vperm.xlu0 %730, %v657
    %v732 = vpop.permute.xlu0 %731
    %735 = vset.pattern.permute.xlu0 0
    %736 = vperm.xlu0 %735, %v658
    %v737 = vpop.permute.xlu0 %736
    %740 = vset.pattern.permute.xlu0 0
    %741 = vperm.xlu0 %740, %v659
    %v742 = vpop.permute.xlu0 %741
    %745 = vset.pattern.permute.xlu0 0
    %746 = vperm.xlu0 %745, %v660
    %v747 = vpop.permute.xlu0 %746
    %750 = vset.pattern.permute.xlu0 0
    %751 = vperm.xlu0 %750, %v661
    %v752 = vpop.permute.xlu0 %751
    %755 = vset.pattern.permute.xlu0 0
    %756 = vperm.xlu0 %755, %v662
    %v757 = vpop.permute.xlu0 %756
    %760 = vset.pattern.permute.xlu0 0
    %761 = vperm.xlu0 %760, %v663
    %v762 = vpop.permute.xlu0 %761
    %765 = vset.pattern.permute.xlu0 0
    %766 = vperm.xlu0 %765, %v664
    %v767 = vpop.permute.xlu0 %766
    %770 = vset.pattern.permute.xlu0 0
    %771 = vperm.xlu0 %770, %v665
    %v772 = vpop.permute.xlu0 %771
    %775 = vset.pattern.permute.xlu0 0
    %776 = vperm.xlu0 %775, %v666
    %v777 = vpop.permute.xlu0 %776
    %780 = vset.pattern.permute.xlu0 0
    %781 = vperm.xlu0 %780, %v667
    %v782 = vpop.permute.xlu0 %781
    %785 = vset.pattern.permute.xlu0 0
    %786 = vperm.xlu0 %785, %v668
    %v787 = vpop.permute.xlu0 %786
    %790 = vset.pattern.permute.xlu0 0
    %791 = vperm.xlu0 %790, %v669
    %v792 = vpop.permute.xlu0 %791
    %795 = vset.pattern.permute.xlu0 0
    %796 = vperm.xlu0 %795, %v670
    %v797 = vpop.permute.xlu0 %796
    %800 = vset.pattern.permute.xlu0 0
    %801 = vperm.xlu0 %800, %v671
    %v802 = vpop.permute.xlu0 %801
    %805 = vset.pattern.permute.xlu0 0
    %806 = vperm.xlu0 %805, %v672
    %v807 = vpop.permute.xlu0 %806
    %810 = vset.pattern.permute.xlu0 0
    %811 = vperm.xlu0 %810, %v673
    %v812 = vpop.permute.xlu0 %811
    %815 = vset.pattern.permute.xlu0 0
    %816 = vperm.xlu0 %815, %v674
    %v817 = vpop.permute.xlu0 %816
    %820 = vset.pattern.permute.xlu0 0
    %821 = vperm.xlu0 %820, %v675
    %v822 = vpop.permute.xlu0 %821
    %825 = vset.pattern.permute.xlu0 0
    %826 = vperm.xlu0 %825, %v676
    %v827 = vpop.permute.xlu0 %826
    %830 = vset.pattern.permute.xlu0 0
    %831 = vperm.xlu0 %830, %v677
    %v832 = vpop.permute.xlu0 %831
    %835 = vset.pattern.permute.xlu0 0
    %836 = vperm.xlu0 %835, %v678
    %v837 = vpop.permute.xlu0 %836
    %v871 = vunpack.c.l.b16 %v615
    %v872 = vunpack.c.l.b16 %v616
    %v873 = vunpack.c.l.b16 %v617
    %v874 = vunpack.c.l.b16 %v618
    %v875 = vunpack.c.l.b16 %v619
    %v876 = vunpack.c.l.b16 %v620
    %v877 = vunpack.c.l.b16 %v621
    %v878 = vunpack.c.l.b16 %v622
    %v879 = vunpack.c.l.b16 %v623
    %v880 = vunpack.c.l.b16 %v624
    %v881 = vunpack.c.l.b16 %v625
    %v882 = vunpack.c.l.b16 %v626
    %v883 = vunpack.c.l.b16 %v627
    %v884 = vunpack.c.l.b16 %v628
    %v885 = vunpack.c.l.b16 %v629
    %v886 = vunpack.c.l.b16 %v630
    %v887 = vunpack.c.l.b16 %v631
    %v888 = vunpack.c.l.b16 %v632
    %v889 = vunpack.c.l.b16 %v633
    %v890 = vunpack.c.l.b16 %v634
    %v891 = vunpack.c.l.b16 %v635
    %v892 = vunpack.c.l.b16 %v636
    %v893 = vunpack.c.l.b16 %v637
    %v894 = vunpack.c.l.b16 %v638
    %v895 = vunpack.c.l.b16 %v639
    %v896 = vunpack.c.l.b16 %v640
    %v897 = vunpack.c.l.b16 %v641
    %v898 = vunpack.c.l.b16 %v642
    %v899 = vunpack.c.l.b16 %v643
    %v900 = vunpack.c.l.b16 %v644
    %v901 = vunpack.c.l.b16 %v645
    %v902 = vunpack.c.l.b16 %v646
    %v903 = vpack.c.b16 %v872, %v871
    %v904 = vpack.c.b16 %v874, %v873
    %v905 = vpack.c.b16 %v876, %v875
    %v906 = vpack.c.b16 %v878, %v877
    %v907 = vpack.c.b16 %v880, %v879
    %v908 = vpack.c.b16 %v882, %v881
    %v909 = vpack.c.b16 %v884, %v883
    %v910 = vpack.c.b16 %v886, %v885
    %v911 = vpack.c.b16 %v888, %v887
    %v912 = vpack.c.b16 %v890, %v889
    %v913 = vpack.c.b16 %v892, %v891
    %v914 = vpack.c.b16 %v894, %v893
    %v915 = vpack.c.b16 %v896, %v895
    %v916 = vpack.c.b16 %v898, %v897
    %v917 = vpack.c.b16 %v900, %v899
    %v918 = vpack.c.b16 %v902, %v901
    %935 = vmatprep.subr.bf16.mxu0 0
    %936 = vmatpush1.bf16.msra.mxu0 %v614
    %937 = vmatprep.subr.bf16.mxu0 0
    %938 = vmatpush1.bf16.msra.mxu0 %v613
    %939 = vmatprep.subr.bf16.mxu0 0
    %940 = vmatpush1.bf16.msra.mxu0 %v612
    %941 = vmatprep.subr.bf16.mxu0 0
    %942 = vmatpush1.bf16.msra.mxu0 %v611
    %943 = vmatprep.subr.bf16.mxu0 0
    %944 = vmatpush1.bf16.msra.mxu0 %v610
    %945 = vmatprep.subr.bf16.mxu0 0
    %946 = vmatpush1.bf16.msra.mxu0 %v609
    %947 = vmatprep.subr.bf16.mxu0 0
    %948 = vmatpush1.bf16.msra.mxu0 %v608
    %949 = vmatprep.subr.bf16.mxu0 0
    %950 = vmatpush1.bf16.msra.mxu0 %v607
    %951 = vmatprep.subr.bf16.mxu0 0
    %952 = vmatpush2.bf16.msra.mxu0 0
    %953 = vmatprep.subr.bf16.mxu0 0
    %954 = vmatpush2.bf16.msra.mxu0 0
    %955 = vmatprep.subr.bf16.mxu0 0
    %956 = vmatpush2.bf16.msra.mxu0 0
    %957 = vmatprep.subr.bf16.mxu0 0
    %958 = vmatpush2.bf16.msra.mxu0 0
    %959 = vmatprep.subr.bf16.mxu0 0
    %960 = vmatpush2.bf16.msra.mxu0 0
    %961 = vmatprep.subr.bf16.mxu0 0
    %962 = vmatpush2.bf16.msra.mxu0 0
    %963 = vmatprep.subr.bf16.mxu0 0
    %964 = vmatpush2.bf16.msra.mxu0 0
    %965 = vmatprep.subr.bf16.mxu0 0
    %966 = vmatpush2.bf16.msra.mxu0 0
    %967 = vmatprep.mubr.bf16.mxu0 0
    %968 = vmatmul.mubr.bf16.gmra.mxu0 %v903
    %v969 = vpop.f32.mrf.mxu0
    %v970 = vadd.f32 %v682, %v969
    %v971 = vpop.f32.mrf.mxu0
    %v972 = vpop.f32.mrf.mxu0
    %v973 = vadd.f32 %v687, %v972
    %v974 = vpop.f32.mrf.mxu0
    %975 = vmatprep.mubr.bf16.mxu0 0
    %976 = vmatmul.mubr.bf16.gmra.mxu0 %v904
    %v977 = vpop.f32.mrf.mxu0
    %v978 = vadd.f32 %v692, %v977
    %v979 = vpop.f32.mrf.mxu0
    %v980 = vpop.f32.mrf.mxu0
    %v981 = vadd.f32 %v697, %v980
    %v982 = vpop.f32.mrf.mxu0
    %983 = vmatprep.mubr.bf16.mxu0 0
    %984 = vmatmul.mubr.bf16.gmra.mxu0 %v905
    %v985 = vpop.f32.mrf.mxu0
    %v986 = vadd.f32 %v702, %v985
    %v987 = vpop.f32.mrf.mxu0
    %v988 = vpop.f32.mrf.mxu0
    %v989 = vadd.f32 %v707, %v988
    %v990 = vpop.f32.mrf.mxu0
    %991 = vmatprep.mubr.bf16.mxu0 0
    %992 = vmatmul.mubr.bf16.gmra.mxu0 %v906
    %v993 = vpop.f32.mrf.mxu0
    %v994 = vadd.f32 %v712, %v993
    %v995 = vpop.f32.mrf.mxu0
    %v996 = vpop.f32.mrf.mxu0
    %v997 = vadd.f32 %v717, %v996
    %v998 = vpop.f32.mrf.mxu0
    %999 = vmatprep.mubr.bf16.mxu0 0
    %1000 = vmatmul.mubr.bf16.gmra.mxu0 %v907
    %v1001 = vpop.f32.mrf.mxu0
    %v1002 = vadd.f32 %v722, %v1001
    %v1003 = vpop.f32.mrf.mxu0
    %v1004 = vpop.f32.mrf.mxu0
    %v1005 = vadd.f32 %v727, %v1004
    %v1006 = vpop.f32.mrf.mxu0
    %1007 = vmatprep.mubr.bf16.mxu0 0
    %1008 = vmatmul.mubr.bf16.gmra.mxu0 %v908
    %v1009 = vpop.f32.mrf.mxu0
    %v1010 = vadd.f32 %v732, %v1009
    %v1011 = vpop.f32.mrf.mxu0
    %v1012 = vpop.f32.mrf.mxu0
    %v1013 = vadd.f32 %v737, %v1012
    %v1014 = vpop.f32.mrf.mxu0
    %1015 = vmatprep.mubr.bf16.mxu0 0
    %1016 = vmatmul.mubr.bf16.gmra.mxu0 %v909
    %v1017 = vpop.f32.mrf.mxu0
    %v1018 = vadd.f32 %v742, %v1017
    %v1019 = vpop.f32.mrf.mxu0
    %v1020 = vpop.f32.mrf.mxu0
    %v1021 = vadd.f32 %v747, %v1020
    %v1022 = vpop.f32.mrf.mxu0
    %1023 = vmatprep.mubr.bf16.mxu0 0
    %1024 = vmatmul.mubr.bf16.gmra.mxu0 %v910
    %v1025 = vpop.f32.mrf.mxu0
    %v1026 = vadd.f32 %v752, %v1025
    %v1027 = vpop.f32.mrf.mxu0
    %v1028 = vpop.f32.mrf.mxu0
    %v1029 = vadd.f32 %v757, %v1028
    %v1030 = vpop.f32.mrf.mxu0
    %1031 = vmatprep.mubr.bf16.mxu0 0
    %1032 = vmatmul.mubr.bf16.gmra.mxu0 %v911
    %v1033 = vpop.f32.mrf.mxu0
    %v1034 = vadd.f32 %v762, %v1033
    %v1035 = vpop.f32.mrf.mxu0
    %v1036 = vpop.f32.mrf.mxu0
    %v1037 = vadd.f32 %v767, %v1036
    %v1038 = vpop.f32.mrf.mxu0
    %1039 = vmatprep.mubr.bf16.mxu0 0
    %1040 = vmatmul.mubr.bf16.gmra.mxu0 %v912
    %v1041 = vpop.f32.mrf.mxu0
    %v1042 = vadd.f32 %v772, %v1041
    %v1043 = vpop.f32.mrf.mxu0
    %v1044 = vpop.f32.mrf.mxu0
    %v1045 = vadd.f32 %v777, %v1044
    %v1046 = vpop.f32.mrf.mxu0
    %1047 = vmatprep.mubr.bf16.mxu0 0
    %1048 = vmatmul.mubr.bf16.gmra.mxu0 %v913
    %v1049 = vpop.f32.mrf.mxu0
    %v1050 = vadd.f32 %v782, %v1049
    %v1051 = vpop.f32.mrf.mxu0
    %v1052 = vpop.f32.mrf.mxu0
    %v1053 = vadd.f32 %v787, %v1052
    %v1054 = vpop.f32.mrf.mxu0
    %1055 = vmatprep.mubr.bf16.mxu0 0
    %1056 = vmatmul.mubr.bf16.gmra.mxu0 %v914
    %v1057 = vpop.f32.mrf.mxu0
    %v1058 = vadd.f32 %v792, %v1057
    %v1059 = vpop.f32.mrf.mxu0
    %v1060 = vpop.f32.mrf.mxu0
    %v1061 = vadd.f32 %v797, %v1060
    %v1062 = vpop.f32.mrf.mxu0
    %1063 = vmatprep.mubr.bf16.mxu0 0
    %1064 = vmatmul.mubr.bf16.gmra.mxu0 %v915
    %v1065 = vpop.f32.mrf.mxu0
    %v1066 = vadd.f32 %v802, %v1065
    %v1067 = vpop.f32.mrf.mxu0
    %v1068 = vpop.f32.mrf.mxu0
    %v1069 = vadd.f32 %v807, %v1068
    %v1070 = vpop.f32.mrf.mxu0
    %1071 = vmatprep.mubr.bf16.mxu0 0
    %1072 = vmatmul.mubr.bf16.gmra.mxu0 %v916
    %v1073 = vpop.f32.mrf.mxu0
    %v1074 = vadd.f32 %v812, %v1073
    %v1075 = vpop.f32.mrf.mxu0
    %v1076 = vpop.f32.mrf.mxu0
    %v1077 = vadd.f32 %v817, %v1076
    %v1078 = vpop.f32.mrf.mxu0
    %1079 = vmatprep.mubr.bf16.mxu0 0
    %1080 = vmatmul.mubr.bf16.gmra.mxu0 %v917
    %v1081 = vpop.f32.mrf.mxu0
    %v1082 = vadd.f32 %v822, %v1081
    %v1083 = vpop.f32.mrf.mxu0
    %v1084 = vpop.f32.mrf.mxu0
    %v1085 = vadd.f32 %v827, %v1084
    %v1086 = vpop.f32.mrf.mxu0
    %1087 = vmatprep.mubr.bf16.mxu0 0
    %1088 = vmatmul.mubr.bf16.gmra.mxu0 %v918
    %v1089 = vpop.f32.mrf.mxu0
    %v1090 = vadd.f32 %v832, %v1089
    %v1091 = vpop.f32.mrf.mxu0
    %v1092 = vpop.f32.mrf.mxu0
    %v1093 = vadd.f32 %v837, %v1092
    %v1094 = vpop.f32.mrf.mxu0
    %1095 = vdwg.mxu0
    %v1096 = vmax.f32 %v970, 0.0
    %v1097 = vmax.f32 %v973, 0.0
    %v1098 = vmax.f32 %v978, 0.0
    %v1099 = vmax.f32 %v981, 0.0
    %v1100 = vmax.f32 %v986, 0.0
    %v1101 = vmax.f32 %v989, 0.0
    %v1102 = vmax.f32 %v994, 0.0
    %v1103 = vmax.f32 %v997, 0.0
    %v1104 = vmax.f32 %v1002, 0.0
    %v1105 = vmax.f32 %v1005, 0.0
    %v1106 = vmax.f32 %v1010, 0.0
    %v1107 = vmax.f32 %v1013, 0.0
    %v1108 = vmax.f32 %v1018, 0.0
    %v1109 = vmax.f32 %v1021, 0.0
    %v1110 = vmax.f32 %v1026, 0.0
    %v1111 = vmax.f32 %v1029, 0.0
    %v1112 = vmax.f32 %v1034, 0.0
    %v1113 = vmax.f32 %v1037, 0.0
    %v1114 = vmax.f32 %v1042, 0.0
    %v1115 = vmax.f32 %v1045, 0.0
    %v1116 = vmax.f32 %v1050, 0.0
    %v1117 = vmax.f32 %v1053, 0.0
    %v1118 = vmax.f32 %v1058, 0.0
    %v1119 = vmax.f32 %v1061, 0.0
    %v1120 = vmax.f32 %v1066, 0.0
    %v1121 = vmax.f32 %v1069, 0.0
    %v1122 = vmax.f32 %v1074, 0.0
    %v1123 = vmax.f32 %v1077, 0.0
    %v1124 = vmax.f32 %v1082, 0.0
    %v1125 = vmax.f32 %v1085, 0.0
    %v1126 = vmax.f32 %v1090, 0.0
    %v1127 = vmax.f32 %v1093, 0.0
    %v1128 = vpack.c.bf16 %v1097, %v1096
    %v1129 = vpack.c.bf16 %v1099, %v1098
    %v1130 = vpack.c.bf16 %v1101, %v1100
    %v1131 = vpack.c.bf16 %v1103, %v1102
    %v1132 = vpack.c.bf16 %v1105, %v1104
    %v1133 = vpack.c.bf16 %v1107, %v1106
    %v1134 = vpack.c.bf16 %v1109, %v1108
    %v1135 = vpack.c.bf16 %v1111, %v1110
    %v1136 = vpack.c.bf16 %v1113, %v1112
    %v1137 = vpack.c.bf16 %v1115, %v1114
    %v1138 = vpack.c.bf16 %v1117, %v1116
    %v1139 = vpack.c.bf16 %v1119, %v1118
    %v1140 = vpack.c.bf16 %v1121, %v1120
    %v1141 = vpack.c.bf16 %v1123, %v1122
    %v1142 = vpack.c.bf16 %v1125, %v1124
    %v1143 = vpack.c.bf16 %v1127, %v1126
    %v1144 = vld [vmem:[%s9] sm:$0x77]
    %v1145 = vld [vmem:[%s10] sm:$0x1f]
    %1147 = vset.pattern.permute.xlu0 0
    %1148 = vperm.xlu0 %1147, %v1145
    %v1149 = vpop.permute.xlu0 %1148
    %v1152 = vunpack.c.l.b16 %v1144
    %v1153 = vunpack.c.h.b16 %v1144
    %v1154 = vpack.c.b16 %v1152, %v1152
    %v1155 = vpack.c.b16 %v1153, %v1153
    %1158 = vmatprep.subr.bf16.mxu0 0
    %1159 = vmatpush1.bf16.msra.mxu0 %v1135
    %1160 = vmatprep.subr.bf16.mxu0 0
    %1161 = vmatpush1.bf16.msra.mxu0 %v1134
    %1162 = vmatprep.subr.bf16.mxu0 0
    %1163 = vmatpush1.bf16.msra.mxu0 %v1133
    %1164 = vmatprep.subr.bf16.mxu0 0
    %1165 = vmatpush1.bf16.msra.mxu0 %v1132
    %1166 = vmatprep.subr.bf16.mxu0 0
    %1167 = vmatpush1.bf16.msra.mxu0 %v1131
    %1168 = vmatprep.subr.bf16.mxu0 0
    %1169 = vmatpush1.bf16.msra.mxu0 %v1130
    %1170 = vmatprep.subr.bf16.mxu0 0
    %1171 = vmatpush1.bf16.msra.mxu0 %v1129
    %1172 = vmatprep.subr.bf16.mxu0 0
    %1173 = vmatpush1.bf16.msra.mxu0 %v1128
    %1174 = vmatprep.subr.bf16.mxu0 0
    %1175 = vmatpush2.bf16.msra.mxu0 %v1143
    %1176 = vmatprep.subr.bf16.mxu0 0
    %1177 = vmatpush2.bf16.msra.mxu0 %v1142
    %1178 = vmatprep.subr.bf16.mxu0 0
    %1179 = vmatpush2.bf16.msra.mxu0 %v1141
    %1180 = vmatprep.subr.bf16.mxu0 0
    %1181 = vmatpush2.bf16.msra.mxu0 %v1140
    %1182 = vmatprep.subr.bf16.mxu0 0
    %1183 = vmatpush2.bf16.msra.mxu0 %v1139
    %1184 = vmatprep.subr.bf16.mxu0 0
    %1185 = vmatpush2.bf16.msra.mxu0 %v1138
    %1186 = vmatprep.subr.bf16.mxu0 0
    %1187 = vmatpush2.bf16.msra.mxu0 %v1137
    %1188 = vmatprep.subr.bf16.mxu0 0
    %1189 = vmatpush2.bf16.msra.mxu0 %v1136
    %1190 = vmatprep.mubr.bf16.mxu0 %v1155
    %1191 = vmatmul.mubr.bf16.gmra.mxu0 %v1154
    %v1192 = vpop.f32.mrf.mxu0
    %v1193 = vadd.f32 %v1149, %v1192
    %v1194 = vpop.f32.mrf.mxu0
    %v1195 = vpop.f32.mrf.mxu0
    %v1196 = vpop.f32.mrf.mxu0
    %1197 = vdwg.mxu0
    %v1198 = vxor.u32 %v1193, 2147483648
    %v1199 = vmul.f32 %v1198, 1.442695
    %v1200 = vpow.pop %v1199
    %v1201 = vadd.f32 %v1200, 1.0
    %v1202 = vrcp.pop %v1201
    %v1203 = vmul.f32 1.0, %v1202
    %1204 = vst [vmem:[#allocation2] sm:$0x1f] %v1203
    // Predicated region
    $region46: #{tpu_custom_call.1} parent=1 // pred_check
      _
    $region47: #{tpu_custom_call.1} parent=1 // pred_check_branch
      %1206 = sbr.rel (0) target = $region49
    $region48: #{tpu_custom_call.1} parent=1 // pred_region
      %s1208 = ssub.s32 128, 128
      %1209 = vsyncadd [#allocation3], %s1208
      %s1211 = sshll.u32 [#allocation2], 4
      %s1212 = int_to_ptr.vmem [resolvable:$true] %s1211
      %1214 = dma.vmem_to_hbm [thread:$0]  %s1212, 128, %s11, [#allocation3]
    $region49: #{tpu_custom_call.1} parent=1 // pred_fallthru
      _
    // Predicated region
    $region50: #{tpu_custom_call.1} parent=1 // pred_check
      _
    $region51: #{tpu_custom_call.1} parent=1 // pred_check_branch
      %1216 = sbr.rel (0) target = $region53
    $region52: #{tpu_custom_call.1} parent=1 // pred_region
      %1217 = dma.done [#allocation3], 128
    $region53: #{tpu_custom_call.1} parent=1 // pred_fallthru
      _
    %1218 = vsyncpa [#allocation3], 1

</llo_original>
